<compile_context>
chip_gen: v7x
topology: tpu7x:2x2x1
jax: 0.10.0
libtpu: 0.0.40
codegen_flags: <defaults>
</compile_context>

<pallas_src>
import functools

import jax
import jax.numpy as jnp
from jax import lax
from jax.experimental import pallas as pl
from jax.experimental.pallas import tpu as pltpu


@functools.lru_cache(maxsize=None)
def _probe_roll_shift(w):
    """Find the pltpu.roll shift realizing y[:, j] = x[:, (j + 2) % w].

    Probes (once per width) both the rotate direction convention and whether
    a lane roll lowers at this exact (non-128-aligned) width.  Returns the
    shift to use, or None if pltpu.roll is unusable (slice+concat fallback).
    """
    def probe_kernel(x_ref, o_ref):
        o_ref[...] = pltpu.roll(x_ref[...], shift=2, axis=1)

    x = jnp.broadcast_to(jnp.arange(w, dtype=jnp.float32), (8, w))
    try:
        y = jax.block_until_ready(
            pl.pallas_call(
                probe_kernel,
                out_shape=jax.ShapeDtypeStruct((8, w), jnp.float32),
            )(x))
    except Exception:  # lowering/compile failure at this width -> fallback
        return None
    if float(y[0, 0]) == 2.0:   # roll(x, 2)[:, j] == x[:, j + 2]
        return 2
    if float(y[0, 2]) == 0.0:   # jnp.roll convention -> use shift = w - 2
        return w - 2
    return None


def _yolo_v1_loss_kernel(p_ref, t_ref, wd_ref, wwh_ref, o_ref, *,
                         batch, tile_rows, roll_shift, mask_tail):
    """One batch tile.

    p_ref/t_ref: (TB, W) rows in their native dtype.
    wd_ref/wwh_ref: (8, W) f32 grid-invariant column weights (VMEM-resident).
    o_ref: (8, W) f32 per-tile partial sums (reduced over vreg-row groups).
    """
    tb, w = p_ref.shape
    g = tb // 8

    wd = wd_ref[...]    # 1 on class cols, Lambda on box slots {0,1}, 0 on {2,3}
    wwh = wwh_ref[...]  # Lambda on box slots {0,1} past class_end, 0 elsewhere

    def shift2(x):
        # y[:, j] = x[:, (j + 2) % W]; the 2 wraparound lanes (and the class
        # region) land on zero-weight columns of wwh, so they contribute 0.
        if roll_shift is not None:
            return pltpu.roll(x, shift=roll_shift, axis=1)      # XLU rotate
        return jnp.concatenate([x[:, 2:], x[:, :2]], axis=1)    # fallback

    base = pl.program_id(0) * tile_rows
    sub = lax.broadcasted_iota(jnp.int32, (8, 1), 0)

    acc = jnp.zeros((8, w), jnp.float32)
    # Static loop over aligned (8, W) sublane groups streamed from the input
    # VMEM blocks: no full-tile intermediates, all VPU/EUP/XLU work per group.
    for k in range(g):
        rows = slice(k * 8, (k + 1) * 8)
        p = p_ref[rows, :].astype(jnp.float32)   # in-kernel upcast (free on f32)
        t = t_ref[rows, :].astype(jnp.float32)

        d = p - t
        sq = d * d                                         # class + xy term

        # wh term: pairs column c with column c+2 inside each box 4-group.
        # f32 sqrt on the EUP (kept f32 for v5e; see review note on bf16).
        dp = jnp.sqrt(jnp.abs(shift2(p) - p) + 1e-7)
        dt = jnp.sqrt(jnp.abs(shift2(t) - t) + 1e-7)
        dwh = dp - dt
        whsq = dwh * dwh

        chunk = sq * wd + whsq * wwh
        if mask_tail:
            # Ragged last tile: rows past `batch` hold undefined VMEM data;
            # select them to exactly 0 (select, not multiply, so NaNs die).
            row = base + k * 8 + sub
            chunk = jnp.where(row < batch, chunk, 0.0)
        acc = acc + chunk

    o_ref[...] = acc


def yolo_v1_loss(predict, target, *, Lambda=4, S=7, B=1, C=20,
                 block_rows=1024, vmem_limit_bytes=48 * 1024 * 1024):
    """Pallas-TPU forward pass of YoloV1Loss (sum-reduced scalar loss).

    On v5e (firmly HBM-bound, 128 MiB VMEM) block_rows can be raised further
    (e.g. 2048) together with vmem_limit_bytes; keep <=1024 on v7x (64 MiB).
    """
    del S  # S only determines the flat row width, which we read from the input
    length = C + 4 * B
    batch = target.shape[0]
    p = jnp.reshape(predict, (batch, -1))   # native dtype, no wrapper cast
    t = jnp.reshape(target, (batch, -1))
    w = p.shape[1]
    if w % length != 0:
        raise ValueError(f"row width {w} not divisible by length {length}")
    n_cells = w // length
    class_end = min(C, n_cells) * length
    if (w - class_end) % 4 != 0:
        raise ValueError("box region size must be divisible by 4")

    # Grid-invariant per-column weights (tiny; computed once per call).
    col = jnp.arange(w, dtype=jnp.int32)
    in_box = col >= class_end
    is_xy = in_box & (((col - class_end) % 4) < 2)
    lam = jnp.float32(Lambda)
    wd_row = jnp.where(in_box, jnp.where(is_xy, lam, 0.0), 1.0)
    wwh_row = jnp.where(is_xy, lam, 0.0)
    wd = jnp.tile(wd_row[None, :].astype(jnp.float32), (8, 1))
    wwh = jnp.tile(wwh_row[None, :].astype(jnp.float32), (8, 1))

    # Batch tiling: multiple-of-8 row tiles, capped so there are >=2 tiles
    # whenever the batch allows it (keeps both v7x TensorCores loaded).
    # No HBM-side padding: the ragged tail tile is masked in-kernel.
    half = -(-batch // 2)
    half8 = ((half + 7) // 8) * 8
    tb = max(8, min(int(block_rows), half8))
    num_tiles = (batch + tb - 1) // tb
    mask_tail = (batch % tb) != 0

    kernel = functools.partial(
        _yolo_v1_loss_kernel,
        batch=int(batch),
        tile_rows=int(tb),
        roll_shift=_probe_roll_shift(int(w)),
        mask_tail=bool(mask_tail),
    )

    partials = pl.pallas_call(
        kernel,
        out_shape=jax.ShapeDtypeStruct((num_tiles, 8, w), jnp.float32),
        grid_spec=pltpu.PrefetchScalarGridSpec(
            num_scalar_prefetch=0,
            grid=(num_tiles,),
            in_specs=[
                pl.BlockSpec((tb, w), lambda i: (i, 0)),
                pl.BlockSpec((tb, w), lambda i: (i, 0)),
                pl.BlockSpec((8, w), lambda i: (0, 0)),   # resident weights
                pl.BlockSpec((8, w), lambda i: (0, 0)),   # resident weights
            ],
            out_specs=pl.BlockSpec((None, 8, w), lambda i: (i, 0, 0)),
        ),
        compiler_params=pltpu.CompilerParams(
            dimension_semantics=("parallel",),
            vmem_limit_bytes=int(vmem_limit_bytes),
        ),
    )(p, t, wd, wwh)

    # Dense final reduction over the tiny per-tile partial slabs.
    return jnp.sum(partials)


def _yolo_v1_loss_ref(predict, target, *, Lambda=4, S=7, B=1, C=20):
    """Pure-JAX port of the PyTorch module (same quirky cell-axis slicing)."""
    del S
    length = C + 4 * B
    batch = target.shape[0]
    p = jnp.asarray(predict, jnp.float32).reshape(batch, -1, length)
    t = jnp.asarray(target, jnp.float32).reshape(batch, -1, length)
    bp = p[:, C:].reshape(-1, 4)
    bt = t[:, C:].reshape(-1, 4)
    xy_loss = jnp.sum((bp[:, :2] - bt[:, :2]) ** 2)
    pwh = jnp.sqrt(jnp.abs(bp[:, 2:] - bp[:, :2]) + 1e-7)
    twh = jnp.sqrt(jnp.abs(bt[:, 2:] - bt[:, :2]) + 1e-7)
    wh_loss = jnp.sum((pwh - twh) ** 2)
    class_loss = jnp.sum((p[:, :C] - t[:, :C]) ** 2)
    return Lambda * (xy_loss + wh_loss) + class_loss


if __name__ == "__main__":
    Lambda, S, B, C = 4, 7, 1, 20
    length = C + 4 * B          # 24
    feat = S * S * length       # 1176

    key = jax.random.PRNGKey(0)
    # batch=6 exercises the in-kernel ragged-tail mask (single tile);
    # batch=37 exercises a multi-tile grid with resident weights + tail mask.
    for batch in (6, 37):
        kp, kt = jax.random.split(jax.random.fold_in(key, batch))
        predict = jax.random.normal(kp, (batch, feat), dtype=jnp.float32)
        target = jax.random.normal(kt, (batch, feat), dtype=jnp.float32)

        loss = jax.block_until_ready(
            yolo_v1_loss(predict, target, Lambda=Lambda, S=S, B=B, C=C))
        ref = jax.block_until_ready(
            _yolo_v1_loss_ref(predict, target, Lambda=Lambda, S=S, B=B, C=C))

        if not bool(jnp.isfinite(loss)):
            raise AssertionError(f"non-finite loss: {float(loss)}")
        rel_err = abs(float(loss) - float(ref)) / max(1.0, abs(float(ref)))
        if rel_err > 1e-4:
            raise AssertionError(
                f"batch={batch}: pallas={float(loss)} ref={float(ref)} "
                f"rel={rel_err}")

    print("KERNEL_OK")
</pallas_src>

<mosaic_0001>
module attributes {stable_mosaic.version = 11 : i64} {
  func.func @probe_kernel(%arg0: memref<8x1176xf32, #tpu.memory_space<vmem>>, %arg1: memref<8x1176xf32, #tpu.memory_space<vmem>>) attributes {dimension_semantics = [], scalar_prefetch = 0 : i64, scratch_operands = 0 : i64, tpu.core_type = #tpu.core_type<tc>} {
    %c0 = arith.constant 0 : index
    %c0_0 = arith.constant 0 : index
    %0 = vector.load %arg0[%c0, %c0_0] : memref<8x1176xf32, #tpu.memory_space<vmem>>, vector<8x1176xf32>
    %c2_i32 = arith.constant 2 : i32
    %1 = tpu.dynamic_rotate %0 by %c2_i32 dim 1 : vector<8x1176xf32>, i32 -> vector<8x1176xf32>
    %c0_1 = arith.constant 0 : index
    %c0_2 = arith.constant 0 : index
    %2 = vector.load %arg1[%c0_1, %c0_2] : memref<8x1176xf32, #tpu.memory_space<vmem>>, vector<8x1176xf32>
    tpu.vector_store %arg1[%c0_1, %c0_2], %1 {strides = array<i32>} : memref<8x1176xf32, #tpu.memory_space<vmem>>, vector<8x1176xf32>,
    return
  }
}

module attributes {stable_mosaic.version = 11 : i64} {
  func.func @_yolo_v1_loss_kernel(%arg0: i32, %arg1: memref<8x1176xf32, #tpu.memory_space<vmem>>, %arg2: memref<8x1176xf32, #tpu.memory_space<vmem>>, %arg3: memref<8x1176xf32, #tpu.memory_space<vmem>>, %arg4: memref<8x1176xf32, #tpu.memory_space<vmem>>, %arg5: memref<1x8x1176xf32, #tpu.memory_space<vmem>>) attributes {dimension_semantics = [#tpu.dimension_semantics<parallel>], iteration_bounds = array<i64: 1>, scalar_prefetch = 0 : i64, scratch_operands = 0 : i64, tpu.core_type = #tpu.core_type<tc>, window_params = [{transform_indices = @transform_0, window_bounds = array<i64: 8, 1176>}, {transform_indices = @transform_1, window_bounds = array<i64: 8, 1176>}, {pipeline_mode = #tpu.pipeline_mode<synchronous>, transform_indices = @transform_2, window_bounds = array<i64: 8, 1176>}, {pipeline_mode = #tpu.pipeline_mode<synchronous>, transform_indices = @transform_3, window_bounds = array<i64: 8, 1176>}, {transform_indices = @transform_4, window_bounds = array<i64: 1, 8, 1176>}]} {
    %c0 = arith.constant 0 : index
    %c0_0 = arith.constant 0 : index
    %0 = vector.load %arg3[%c0, %c0_0] : memref<8x1176xf32, #tpu.memory_space<vmem>>, vector<8x1176xf32>
    %c0_1 = arith.constant 0 : index
    %c0_2 = arith.constant 0 : index
    %1 = vector.load %arg4[%c0_1, %c0_2] : memref<8x1176xf32, #tpu.memory_space<vmem>>, vector<8x1176xf32>
    %c8_i32 = arith.constant 8 : i32
    %2 = arith.muli %arg0, %c8_i32 : i32
    %3 = tpu.iota {dimensions = array<i32: 0>} : vector<8x1xi32>
    %cst = arith.constant 0.000000e+00 : f32
    %4 = vector.broadcast %cst : f32 to vector<8x1176xf32>
    %c0_3 = arith.constant 0 : index
    %c0_4 = arith.constant 0 : index
    %5 = vector.load %arg1[%c0_3, %c0_4] : memref<8x1176xf32, #tpu.memory_space<vmem>>, vector<8x1176xf32>
    %c0_5 = arith.constant 0 : index
    %c0_6 = arith.constant 0 : index
    %6 = vector.load %arg2[%c0_5, %c0_6] : memref<8x1176xf32, #tpu.memory_space<vmem>>, vector<8x1176xf32>
    %7 = arith.subf %5, %6 : vector<8x1176xf32>
    %8 = arith.mulf %7, %7 : vector<8x1176xf32>
    %9 = vector.extract_strided_slice %5 {offsets = [0, 2], sizes = [8, 1174], strides = [1, 1]} : vector<8x1176xf32> to vector<8x1174xf32>
    %10 = vector.extract_strided_slice %5 {offsets = [0, 0], sizes = [8, 2], strides = [1, 1]} : vector<8x1176xf32> to vector<8x2xf32>
    %11 = tpu.concatenate %9, %10 in 1 : vector<8x1174xf32>, vector<8x2xf32> -> vector<8x1176xf32>
    %12 = arith.subf %11, %5 : vector<8x1176xf32>
    %13 = math.absf %12 : vector<8x1176xf32>
    %cst_7 = arith.constant 1.000000e-07 : f32
    %14 = vector.broadcast %cst_7 : f32 to vector<8x1176xf32>
    %15 = arith.addf %13, %14 : vector<8x1176xf32>
    %16 = math.sqrt %15 : vector<8x1176xf32>
    %17 = vector.extract_strided_slice %6 {offsets = [0, 2], sizes = [8, 1174], strides = [1, 1]} : vector<8x1176xf32> to vector<8x1174xf32>
    %18 = vector.extract_strided_slice %6 {offsets = [0, 0], sizes = [8, 2], strides = [1, 1]} : vector<8x1176xf32> to vector<8x2xf32>
    %19 = tpu.concatenate %17, %18 in 1 : vector<8x1174xf32>, vector<8x2xf32> -> vector<8x1176xf32>
    %20 = arith.subf %19, %6 : vector<8x1176xf32>
    %21 = math.absf %20 : vector<8x1176xf32>
    %cst_8 = arith.constant 1.000000e-07 : f32
    %22 = vector.broadcast %cst_8 : f32 to vector<8x1176xf32>
    %23 = arith.addf %21, %22 : vector<8x1176xf32>
    %24 = math.sqrt %23 : vector<8x1176xf32>
    %25 = arith.subf %16, %24 : vector<8x1176xf32>
    %26 = arith.mulf %25, %25 : vector<8x1176xf32>
    %27 = arith.mulf %8, %0 : vector<8x1176xf32>
    %28 = arith.mulf %26, %1 : vector<8x1176xf32>
    %29 = arith.addf %27, %28 : vector<8x1176xf32>
    %c0_i32 = arith.constant 0 : i32
    %30 = arith.addi %2, %c0_i32 : i32
    %31 = vector.broadcast %30 : i32 to vector<8x1xi32>
    %32 = arith.addi %31, %3 : vector<8x1xi32>
    %c6_i32 = arith.constant 6 : i32
    %33 = vector.broadcast %c6_i32 : i32 to vector<8x1xi32>
    %34 = arith.cmpi slt, %32, %33 : vector<8x1xi32>
    %cst_9 = arith.constant 0.000000e+00 : f32
    %35 = vector.shape_cast %34 : vector<8x1xi1> to vector<8x1xi1>
    %36 = vector.broadcast %35 : vector<8x1xi1> to vector<8x1176xi1>
    %37 = vector.broadcast %cst_9 : f32 to vector<8x1176xf32>
    %38 = arith.select %36, %29, %37 : vector<8x1176xi1>, vector<8x1176xf32>
    %39 = arith.addf %4, %38 : vector<8x1176xf32>
    %c0_10 = arith.constant 0 : index
    %c0_11 = arith.constant 0 : index
    %c0_12 = arith.constant 0 : index
    %40 = vector.load %arg5[%c0_10, %c0_11, %c0_12] : memref<1x8x1176xf32, #tpu.memory_space<vmem>>, vector<1x8x1176xf32>
    %41 = vector.shape_cast %40 : vector<1x8x1176xf32> to vector<8x1176xf32>
    %42 = vector.shape_cast %39 : vector<8x1176xf32> to vector<1x8x1176xf32>
    tpu.vector_store %arg5[%c0_10, %c0_11, %c0_12], %42 {strides = array<i32>} : memref<1x8x1176xf32, #tpu.memory_space<vmem>>, vector<1x8x1176xf32>,
    return
  }
  func.func @transform_0(%arg0: i32) -> (i32, i32) {
    %c0_i32 = arith.constant 0 : i32
    %c0_i32_0 = arith.constant 0 : i32
    return %arg0, %c0_i32 : i32, i32
  }
  func.func @transform_1(%arg0: i32) -> (i32, i32) {
    %c0_i32 = arith.constant 0 : i32
    %c0_i32_0 = arith.constant 0 : i32
    return %arg0, %c0_i32 : i32, i32
  }
  func.func @transform_2(%arg0: i32) -> (i32, i32) {
    %c0_i32 = arith.constant 0 : i32
    %c0_i32_0 = arith.constant 0 : i32
    %c0_i32_1 = arith.constant 0 : i32
    return %c0_i32, %c0_i32_0 : i32, i32
  }
  func.func @transform_3(%arg0: i32) -> (i32, i32) {
    %c0_i32 = arith.constant 0 : i32
    %c0_i32_0 = arith.constant 0 : i32
    %c0_i32_1 = arith.constant 0 : i32
    return %c0_i32, %c0_i32_0 : i32, i32
  }
  func.func @transform_4(%arg0: i32) -> (i32, i32, i32) {
    %c0_i32 = arith.constant 0 : i32
    %c0_i32_0 = arith.constant 0 : i32
    %c0_i32_1 = arith.constant 0 : i32
    return %arg0, %c0_i32, %c0_i32_0 : i32, i32, i32
  }
}

</mosaic_0001>

<llo_original>
// kernel: tpu_custom_call.1
$region0: #{tpu_custom_call.1}
  #allocation0 [shape = 'u32[]', space=smem, size = 0x4, offset = 0x4, fixed_abs, tag = 'smem constant byte address 0x4 - core index']
  #allocation1 [shape = 'u32[144,128]{1,0:T(1,128)}', space=vmem, size = 0x12000, scoped, tag = 'internal scratch']
  %s0 = inlined_call_operand.hbm [shape: f32[8,1176], index: 0, kind: input, shape index: {}]
  %s1 = inlined_call_operand.hbm [shape: f32[8,1176], index: 1, kind: output, shape index: {}]
  %s2 = sld [smem:[#allocation0]]
  $region18: #{tpu_custom_call.1} parent=0
    _
  %s4 = ssub.s32 1, %s2
  %s5 = scalar_select 0, %s4, %s2
  $region1: #{tpu_custom_call.1} parent=0
    #allocation2 [shape = 'u8[40960]{0}', space=vmem, size = 0xa000, scoped, tag = 'input window, operand 0, single buffered']
    #allocation3 [shape = 's32[1]{0}', space=sflag, size = 0x4, scoped, tag = 'scoped memory for tpu_custom_call.1']
    #allocation4 [shape = 's32[1]{0}', space=sflag, size = 0x4, scoped, tag = 'scoped memory for tpu_custom_call.1']
    #allocation5 [shape = 'u8[40960]{0}', space=vmem, size = 0xa000, scoped, tag = 'output window, operand 0, single buffered']
    %6 = vsyncpa [#allocation3], 0
    %7 = vsyncpa [#allocation4], 0
    // Predicated region
    $region2: #{tpu_custom_call.1} parent=1 // pred_check
      _
    $region3: #{tpu_custom_call.1} parent=1 // pred_check_branch
      %9 = sbr.rel (0) target = $region5
    $region4: #{tpu_custom_call.1} parent=1 // pred_region
      %s11 = ssub.s32 1280, 1280
      %12 = vsyncadd [#allocation3], %s11
      %s14 = sshll.u32 [#allocation2], 4
      %s15 = int_to_ptr.vmem [resolvable:$true] %s14
      %17 = dma.hbm_to_vmem [thread:$0]  %s0, 1280, %s15, [#allocation3]
    $region5: #{tpu_custom_call.1} parent=1 // pred_fallthru
      _
    // Predicated region
    $region6: #{tpu_custom_call.1} parent=1 // pred_check
      _
    $region7: #{tpu_custom_call.1} parent=1 // pred_check_branch
      %19 = sbr.rel (0) target = $region9
    $region8: #{tpu_custom_call.1} parent=1 // pred_region
      %20 = dma.done [#allocation3], 1280
    $region9: #{tpu_custom_call.1} parent=1 // pred_fallthru
      _
    %v21 = vld [vmem:[#allocation2] sm:$0xff]
    %v22 = vld [vmem:[#allocation2 + $0x8] sm:$0xff]
    %v23 = vld [vmem:[#allocation2 + $0x10] sm:$0xff]
    %v24 = vld [vmem:[#allocation2 + $0x18] sm:$0xff]
    %v25 = vld [vmem:[#allocation2 + $0x20] sm:$0xff]
    %v26 = vld [vmem:[#allocation2 + $0x28] sm:$0xff]
    %v27 = vld [vmem:[#allocation2 + $0x30] sm:$0xff]
    %v28 = vld [vmem:[#allocation2 + $0x38] sm:$0xff]
    %v29 = vld [vmem:[#allocation2 + $0x40] sm:$0xff]
    %v30 = vld [vmem:[#allocation2 + $0x48] sm:$0xff]
    %vm31 = vcmask 1047744
    %32 = vrot.lane.b32.xlu0 %v21, 24
    %v33 = vpop.permute.xlu0 %32
    %v34 = vsel %vm31, %v33, %v30
    %35 = vrot.lane.b32.xlu0 %v22, 24
    %v36 = vpop.permute.xlu0 %35
    %37 = vrot.lane.b32.xlu0 %v23, 24
    %v38 = vpop.permute.xlu0 %37
    %39 = vrot.lane.b32.xlu0 %v24, 24
    %v40 = vpop.permute.xlu0 %39
    %41 = vrot.lane.b32.xlu0 %v25, 24
    %v42 = vpop.permute.xlu0 %41
    %43 = vrot.lane.b32.xlu0 %v26, 24
    %v44 = vpop.permute.xlu0 %43
    %45 = vrot.lane.b32.xlu0 %v27, 24
    %v46 = vpop.permute.xlu0 %45
    %47 = vrot.lane.b32.xlu0 %v28, 24
    %v48 = vpop.permute.xlu0 %47
    %49 = vrot.lane.b32.xlu0 %v29, 24
    %v50 = vpop.permute.xlu0 %49
    %51 = vrot.lane.b32.xlu0 %v34, 24
    %v52 = vpop.permute.xlu0 %51
    %v53 = vsel %vm31, %v36, %v33
    %v54 = vsel %vm31, %v38, %v36
    %v55 = vsel %vm31, %v40, %v38
    %v56 = vsel %vm31, %v42, %v40
    %v57 = vsel %vm31, %v44, %v42
    %v58 = vsel %vm31, %v46, %v44
    %v59 = vsel %vm31, %v48, %v46
    %v60 = vsel %vm31, %v50, %v48
    %v61 = vsel %vm31, %v52, %v50
    %72 = vrot.lane.b32.xlu0 %v34, 106
    %v73 = vpop.permute.xlu0 %72
    %74 = vrot.lane.b32.xlu0 %v53, 106
    %v75 = vpop.permute.xlu0 %74
    %76 = vrot.lane.b32.xlu0 %v54, 106
    %v77 = vpop.permute.xlu0 %76
    %78 = vrot.lane.b32.xlu0 %v55, 106
    %v79 = vpop.permute.xlu0 %78
    %80 = vrot.lane.b32.xlu0 %v56, 106
    %v81 = vpop.permute.xlu0 %80
    %82 = vrot.lane.b32.xlu0 %v57, 106
    %v83 = vpop.permute.xlu0 %82
    %84 = vrot.lane.b32.xlu0 %v58, 106
    %v85 = vpop.permute.xlu0 %84
    %86 = vrot.lane.b32.xlu0 %v59, 106
    %v87 = vpop.permute.xlu0 %86
    %88 = vrot.lane.b32.xlu0 %v60, 106
    %v89 = vpop.permute.xlu0 %88
    %90 = vrot.lane.b32.xlu0 %v61, 106
    %v91 = vpop.permute.xlu0 %90
    %vm92 = vcmask 867328
    %v93 = vsel %vm92, %v73, %v75
    %v94 = vsel %vm92, %v75, %v77
    %v95 = vsel %vm92, %v77, %v79
    %v96 = vsel %vm92, %v79, %v81
    %v97 = vsel %vm92, %v81, %v83
    %v98 = vsel %vm92, %v83, %v85
    %v99 = vsel %vm92, %v85, %v87
    %v100 = vsel %vm92, %v87, %v89
    %v101 = vsel %vm92, %v89, %v91
    %112 = vst [vmem:[#allocation5] sm:$0xff] %v93
    %113 = vst [vmem:[#allocation5 + $0x8] sm:$0xff] %v94
    %114 = vst [vmem:[#allocation5 + $0x10] sm:$0xff] %v95
    %115 = vst [vmem:[#allocation5 + $0x18] sm:$0xff] %v96
    %116 = vst [vmem:[#allocation5 + $0x20] sm:$0xff] %v97
    %117 = vst [vmem:[#allocation5 + $0x28] sm:$0xff] %v98
    %118 = vst [vmem:[#allocation5 + $0x30] sm:$0xff] %v99
    %119 = vst [vmem:[#allocation5 + $0x38] sm:$0xff] %v100
    %120 = vst [vmem:[#allocation5 + $0x40] sm:$0xff] %v101
    %vm121 = vcmask 195584
    %122 = vst.msk [vmem:[#allocation5 + $0x48] sm:$0xff] %vm121, %v91
    // Predicated region
    $region10: #{tpu_custom_call.1} parent=1 // pred_check
      _
    $region11: #{tpu_custom_call.1} parent=1 // pred_check_branch
      %124 = sbr.rel (0) target = $region13
    $region12: #{tpu_custom_call.1} parent=1 // pred_region
      %s126 = ssub.s32 1280, 1280
      %127 = vsyncadd [#allocation4], %s126
      %s129 = sshll.u32 [#allocation5], 4
      %s130 = int_to_ptr.vmem [resolvable:$true] %s129
      %132 = dma.vmem_to_hbm [thread:$0]  %s130, 1280, %s1, [#allocation4]
    $region13: #{tpu_custom_call.1} parent=1 // pred_fallthru
      _
    // Predicated region
    $region14: #{tpu_custom_call.1} parent=1 // pred_check
      _
    $region15: #{tpu_custom_call.1} parent=1 // pred_check_branch
      %134 = sbr.rel (0) target = $region17
    $region16: #{tpu_custom_call.1} parent=1 // pred_region
      %135 = dma.done [#allocation4], 1280
    $region17: #{tpu_custom_call.1} parent=1 // pred_fallthru
      _
    %136 = vsyncpa [#allocation3], 1
    %137 = vsyncpa [#allocation4], 1

// kernel: tpu_custom_call.1
$region0: #{tpu_custom_call.1}
  #allocation0 [shape = 'u32[]', space=smem, size = 0x4, offset = 0x4, fixed_abs, tag = 'smem constant byte address 0x4 - core index']
  #allocation1 [shape = 'u32[144,128]{1,0:T(1,128)}', space=vmem, size = 0x12000, scoped, tag = 'internal scratch']
  %s0 = inlined_call_operand.hbm [shape: f32[6,1176], index: 0, kind: input, shape index: {}]
  %s1 = inlined_call_operand.hbm [shape: f32[6,1176], index: 1, kind: input, shape index: {}]
  %s2 = inlined_call_operand.hbm [shape: f32[8,1176], index: 2, kind: input, shape index: {}]
  %s3 = inlined_call_operand.hbm [shape: f32[8,1176], index: 3, kind: input, shape index: {}]
  %s4 = inlined_call_operand.hbm [shape: f32[1,8,1176], index: 4, kind: output, shape index: {}]
  %s5 = sld [smem:[#allocation0]]
  $region42: #{tpu_custom_call.1} parent=0
    _
  %s7 = ssub.s32 1, %s5
  %s8 = scalar_select 0, %s7, %s5
  $region1: #{tpu_custom_call.1} parent=0
    #allocation2 [shape = 'u8[40960]{0}', space=vmem, size = 0xa000, scoped, tag = 'input window, operand 0, single buffered']
    #allocation3 [shape = 's32[1]{0}', space=sflag, size = 0x4, scoped, tag = 'scoped memory for tpu_custom_call.1']
    #allocation4 [shape = 's32[1]{0}', space=sflag, size = 0x4, scoped, tag = 'scoped memory for tpu_custom_call.1']
    #allocation5 [shape = 'u8[40960]{0}', space=vmem, size = 0xa000, scoped, tag = 'input window, operand 1, single buffered']
    #allocation6 [shape = 's32[1]{0}', space=sflag, size = 0x4, scoped, tag = 'scoped memory for tpu_custom_call.1']
    #allocation7 [shape = 'u8[40960]{0}', space=vmem, size = 0xa000, scoped, tag = 'input window, operand 2, single buffered']
    #allocation8 [shape = 'u8[40960]{0}', space=vmem, size = 0xa000, scoped, tag = 'input window, operand 3, single buffered']
    #allocation9 [shape = 's32[1]{0}', space=sflag, size = 0x4, scoped, tag = 'scoped memory for tpu_custom_call.1']
    #allocation10 [shape = 'u8[40960]{0}', space=vmem, size = 0xa000, scoped, tag = 'output window, operand 0, single buffered']
    %9 = vsyncpa [#allocation3], 0
    %10 = vsyncpa [#allocation6], 0
    %11 = vsyncpa [#allocation9], 0
    %12 = vsyncpa [#allocation4], 0
    // Predicated region
    $region2: #{tpu_custom_call.1} parent=1 // pred_check
      _
    $region3: #{tpu_custom_call.1} parent=1 // pred_check_branch
      %14 = sbr.rel (0) target = $region5
    $region4: #{tpu_custom_call.1} parent=1 // pred_region
      %s16 = ssub.s32 1280, 1280
      %17 = vsyncadd [#allocation3], %s16
      %s19 = sshll.u32 [#allocation2], 4
      %s20 = int_to_ptr.vmem [resolvable:$true] %s19
      %22 = dma.hbm_to_vmem [thread:$0]  %s0, 1280, %s20, [#allocation3]
    $region5: #{tpu_custom_call.1} parent=1 // pred_fallthru
      _
    // Predicated region
    $region6: #{tpu_custom_call.1} parent=1 // pred_check
      _
    $region7: #{tpu_custom_call.1} parent=1 // pred_check_branch
      %24 = sbr.rel (0) target = $region9
    $region8: #{tpu_custom_call.1} parent=1 // pred_region
      %s26 = ssub.s32 1280, 1280
      %27 = vsyncadd [#allocation6], %s26
      %s29 = sshll.u32 [#allocation5], 4
      %s30 = int_to_ptr.vmem [resolvable:$true] %s29
      %32 = dma.hbm_to_vmem [thread:$0]  %s1, 1280, %s30, [#allocation6]
    $region9: #{tpu_custom_call.1} parent=1 // pred_fallthru
      _
    // Predicated region
    $region10: #{tpu_custom_call.1} parent=1 // pred_check
      _
    $region11: #{tpu_custom_call.1} parent=1 // pred_check_branch
      %34 = sbr.rel (0) target = $region13
    $region12: #{tpu_custom_call.1} parent=1 // pred_region
      %s36 = ssub.s32 1280, 1280
      %37 = vsyncadd [#allocation6], %s36
      %s39 = sshll.u32 [#allocation7], 4
      %s40 = int_to_ptr.vmem [resolvable:$true] %s39
      %42 = dma.hbm_to_vmem [thread:$0]  %s2, 1280, %s40, [#allocation6]
    $region13: #{tpu_custom_call.1} parent=1 // pred_fallthru
      _
    // Predicated region
    $region14: #{tpu_custom_call.1} parent=1 // pred_check
      _
    $region15: #{tpu_custom_call.1} parent=1 // pred_check_branch
      %44 = sbr.rel (0) target = $region17
    $region16: #{tpu_custom_call.1} parent=1 // pred_region
      %s46 = ssub.s32 1280, 1280
      %47 = vsyncadd [#allocation9], %s46
      %s49 = sshll.u32 [#allocation8], 4
      %s50 = int_to_ptr.vmem [resolvable:$true] %s49
      %52 = dma.hbm_to_vmem [thread:$0]  %s3, 1280, %s50, [#allocation9]
    $region17: #{tpu_custom_call.1} parent=1 // pred_fallthru
      _
    // Predicated region
    $region18: #{tpu_custom_call.1} parent=1 // pred_check
      _
    $region19: #{tpu_custom_call.1} parent=1 // pred_check_branch
      %54 = sbr.rel (0) target = $region21
    $region20: #{tpu_custom_call.1} parent=1 // pred_region
      %55 = dma.done [#allocation3], 1280
    $region21: #{tpu_custom_call.1} parent=1 // pred_fallthru
      _
    // Predicated region
    $region22: #{tpu_custom_call.1} parent=1 // pred_check
      _
    $region23: #{tpu_custom_call.1} parent=1 // pred_check_branch
      %57 = sbr.rel (0) target = $region25
    $region24: #{tpu_custom_call.1} parent=1 // pred_region
      %58 = dma.done [#allocation6], 1280
    $region25: #{tpu_custom_call.1} parent=1 // pred_fallthru
      _
    // Predicated region
    $region26: #{tpu_custom_call.1} parent=1 // pred_check
      _
    $region27: #{tpu_custom_call.1} parent=1 // pred_check_branch
      %60 = sbr.rel (0) target = $region29
    $region28: #{tpu_custom_call.1} parent=1 // pred_region
      %61 = dma.done [#allocation6], 1280
    $region29: #{tpu_custom_call.1} parent=1 // pred_fallthru
      _
    // Predicated region
    $region30: #{tpu_custom_call.1} parent=1 // pred_check
      _
    $region31: #{tpu_custom_call.1} parent=1 // pred_check_branch
      %63 = sbr.rel (0) target = $region33
    $region32: #{tpu_custom_call.1} parent=1 // pred_region
      %64 = dma.done [#allocation9], 1280
    $region33: #{tpu_custom_call.1} parent=1 // pred_fallthru
      _
    %v65 = vld [vmem:[#allocation7] sm:$0xff]
    %v66 = vld [vmem:[#allocation7 + $0x8] sm:$0xff]
    %v67 = vld [vmem:[#allocation7 + $0x10] sm:$0xff]
    %v68 = vld [vmem:[#allocation7 + $0x18] sm:$0xff]
    %v69 = vld [vmem:[#allocation7 + $0x20] sm:$0xff]
    %v70 = vld [vmem:[#allocation7 + $0x28] sm:$0xff]
    %v71 = vld [vmem:[#allocation7 + $0x30] sm:$0xff]
    %v72 = vld [vmem:[#allocation7 + $0x38] sm:$0xff]
    %v73 = vld [vmem:[#allocation7 + $0x40] sm:$0xff]
    %v74 = vld [vmem:[#allocation7 + $0x48] sm:$0xff]
    %v75 = vld [vmem:[#allocation8] sm:$0xff]
    %v76 = vld [vmem:[#allocation8 + $0x8] sm:$0xff]
    %v77 = vld [vmem:[#allocation8 + $0x10] sm:$0xff]
    %v78 = vld [vmem:[#allocation8 + $0x18] sm:$0xff]
    %v79 = vld [vmem:[#allocation8 + $0x20] sm:$0xff]
    %v80 = vld [vmem:[#allocation8 + $0x28] sm:$0xff]
    %v81 = vld [vmem:[#allocation8 + $0x30] sm:$0xff]
    %v82 = vld [vmem:[#allocation8 + $0x38] sm:$0xff]
    %v83 = vld [vmem:[#allocation8 + $0x40] sm:$0xff]
    %v84 = vld [vmem:[#allocation8 + $0x48] sm:$0xff]
    %s85 = smul.u32 0, 8
    %v86 = vlaneseq
    %v87 = vshrl.u32 %v86, 7
    %v88 = vld [vmem:[#allocation2] sm:$0xff]
    %v89 = vld [vmem:[#allocation2 + $0x8] sm:$0xff]
    %v90 = vld [vmem:[#allocation2 + $0x10] sm:$0xff]
    %v91 = vld [vmem:[#allocation2 + $0x18] sm:$0xff]
    %v92 = vld [vmem:[#allocation2 + $0x20] sm:$0xff]
    %v93 = vld [vmem:[#allocation2 + $0x28] sm:$0xff]
    %v94 = vld [vmem:[#allocation2 + $0x30] sm:$0xff]
    %v95 = vld [vmem:[#allocation2 + $0x38] sm:$0xff]
    %v96 = vld [vmem:[#allocation2 + $0x40] sm:$0xff]
    %v97 = vld [vmem:[#allocation2 + $0x48] sm:$0xff]
    %v98 = vld [vmem:[#allocation5] sm:$0xff]
    %v99 = vld [vmem:[#allocation5 + $0x8] sm:$0xff]
    %v100 = vld [vmem:[#allocation5 + $0x10] sm:$0xff]
    %v101 = vld [vmem:[#allocation5 + $0x18] sm:$0xff]
    %v102 = vld [vmem:[#allocation5 + $0x20] sm:$0xff]
    %v103 = vld [vmem:[#allocation5 + $0x28] sm:$0xff]
    %v104 = vld [vmem:[#allocation5 + $0x30] sm:$0xff]
    %v105 = vld [vmem:[#allocation5 + $0x38] sm:$0xff]
    %v106 = vld [vmem:[#allocation5 + $0x40] sm:$0xff]
    %v107 = vld [vmem:[#allocation5 + $0x48] sm:$0xff]
    %v108 = vsub.f32 %v88, %v98
    %v109 = vsub.f32 %v89, %v99
    %v110 = vsub.f32 %v90, %v100
    %v111 = vsub.f32 %v91, %v101
    %v112 = vsub.f32 %v92, %v102
    %v113 = vsub.f32 %v93, %v103
    %v114 = vsub.f32 %v94, %v104
    %v115 = vsub.f32 %v95, %v105
    %v116 = vsub.f32 %v96, %v106
    %v117 = vsub.f32 %v97, %v107
    %v118 = vmul.f32 %v108, %v108
    %v119 = vmul.f32 %v109, %v109
    %v120 = vmul.f32 %v110, %v110
    %v121 = vmul.f32 %v111, %v111
    %v122 = vmul.f32 %v112, %v112
    %v123 = vmul.f32 %v113, %v113
    %v124 = vmul.f32 %v114, %v114
    %v125 = vmul.f32 %v115, %v115
    %v126 = vmul.f32 %v116, %v116
    %v127 = vmul.f32 %v117, %v117
    %138 = vrot.lane.b32.xlu0 %v88, 126
    %v139 = vpop.permute.xlu0 %138
    %140 = vrot.lane.b32.xlu0 %v89, 126
    %v141 = vpop.permute.xlu0 %140
    %142 = vrot.lane.b32.xlu0 %v90, 126
    %v143 = vpop.permute.xlu0 %142
    %144 = vrot.lane.b32.xlu0 %v91, 126
    %v145 = vpop.permute.xlu0 %144
    %146 = vrot.lane.b32.xlu0 %v92, 126
    %v147 = vpop.permute.xlu0 %146
    %148 = vrot.lane.b32.xlu0 %v93, 126
    %v149 = vpop.permute.xlu0 %148
    %150 = vrot.lane.b32.xlu0 %v94, 126
    %v151 = vpop.permute.xlu0 %150
    %152 = vrot.lane.b32.xlu0 %v95, 126
    %v153 = vpop.permute.xlu0 %152
    %154 = vrot.lane.b32.xlu0 %v96, 126
    %v155 = vpop.permute.xlu0 %154
    %156 = vrot.lane.b32.xlu0 %v97, 126
    %v157 = vpop.permute.xlu0 %156
    %vm158 = vcmask 1031168
    %v159 = vsel %vm158, %v139, %v141
    %v160 = vsel %vm158, %v141, %v143
    %v161 = vsel %vm158, %v143, %v145
    %v162 = vsel %vm158, %v145, %v147
    %v163 = vsel %vm158, %v147, %v149
    %v164 = vsel %vm158, %v149, %v151
    %v165 = vsel %vm158, %v151, %v153
    %v166 = vsel %vm158, %v153, %v155
    %v167 = vsel %vm158, %v155, %v157
    %178 = vrot.lane.b32.xlu0 %v88, 22
    %v179 = vpop.permute.xlu0 %178
    %vm181 = vcmask 179200
    %v182 = vsel %vm181, %v157, %v179
    %v183 = vsub.f32 %v159, %v88
    %v184 = vsub.f32 %v160, %v89
    %v185 = vsub.f32 %v161, %v90
    %v186 = vsub.f32 %v162, %v91
    %v187 = vsub.f32 %v163, %v92
    %v188 = vsub.f32 %v164, %v93
    %v189 = vsub.f32 %v165, %v94
    %v190 = vsub.f32 %v166, %v95
    %v191 = vsub.f32 %v167, %v96
    %v192 = vsub.f32 %v182, %v97
    %v193 = vand.u32 2147483647, %v183
    %v194 = vand.u32 2147483647, %v184
    %v195 = vand.u32 2147483647, %v185
    %v196 = vand.u32 2147483647, %v186
    %v197 = vand.u32 2147483647, %v187
    %v198 = vand.u32 2147483647, %v188
    %v199 = vand.u32 2147483647, %v189
    %v200 = vand.u32 2147483647, %v190
    %v201 = vand.u32 2147483647, %v191
    %v202 = vand.u32 2147483647, %v192
    %v203 = vadd.f32 %v193, 1e-07
    %v204 = vadd.f32 %v194, 1e-07
    %v205 = vadd.f32 %v195, 1e-07
    %v206 = vadd.f32 %v196, 1e-07
    %v207 = vadd.f32 %v197, 1e-07
    %v208 = vadd.f32 %v198, 1e-07
    %v209 = vadd.f32 %v199, 1e-07
    %v210 = vadd.f32 %v200, 1e-07
    %v211 = vadd.f32 %v201, 1e-07
    %v212 = vadd.f32 %v202, 1e-07
    %v213 = vrsqrt.pop %v203
    %v214 = vmul.f32 %v203, %v213
    %vm215 = vcmp.eq.f32.partialorder %v203, inf
    %v216 = vsel %vm215, %v203, %v214
    %vm217 = vcmp.eq.f32.partialorder %v203, 0.0
    %v218 = vand.u32 %v203, 2147483648
    %v219 = vsel %vm217, %v218, %v216
    %v220 = vrsqrt.pop %v204
    %v221 = vmul.f32 %v204, %v220
    %vm222 = vcmp.eq.f32.partialorder %v204, inf
    %v223 = vsel %vm222, %v204, %v221
    %vm224 = vcmp.eq.f32.partialorder %v204, 0.0
    %v225 = vand.u32 %v204, 2147483648
    %v226 = vsel %vm224, %v225, %v223
    %v227 = vrsqrt.pop %v205
    %v228 = vmul.f32 %v205, %v227
    %vm229 = vcmp.eq.f32.partialorder %v205, inf
    %v230 = vsel %vm229, %v205, %v228
    %vm231 = vcmp.eq.f32.partialorder %v205, 0.0
    %v232 = vand.u32 %v205, 2147483648
    %v233 = vsel %vm231, %v232, %v230
    %v234 = vrsqrt.pop %v206
    %v235 = vmul.f32 %v206, %v234
    %vm236 = vcmp.eq.f32.partialorder %v206, inf
    %v237 = vsel %vm236, %v206, %v235
    %vm238 = vcmp.eq.f32.partialorder %v206, 0.0
    %v239 = vand.u32 %v206, 2147483648
    %v240 = vsel %vm238, %v239, %v237
    %v241 = vrsqrt.pop %v207
    %v242 = vmul.f32 %v207, %v241
    %vm243 = vcmp.eq.f32.partialorder %v207, inf
    %v244 = vsel %vm243, %v207, %v242
    %vm245 = vcmp.eq.f32.partialorder %v207, 0.0
    %v246 = vand.u32 %v207, 2147483648
    %v247 = vsel %vm245, %v246, %v244
    %v248 = vrsqrt.pop %v208
    %v249 = vmul.f32 %v208, %v248
    %vm250 = vcmp.eq.f32.partialorder %v208, inf
    %v251 = vsel %vm250, %v208, %v249
    %vm252 = vcmp.eq.f32.partialorder %v208, 0.0
    %v253 = vand.u32 %v208, 2147483648
    %v254 = vsel %vm252, %v253, %v251
    %v255 = vrsqrt.pop %v209
    %v256 = vmul.f32 %v209, %v255
    %vm257 = vcmp.eq.f32.partialorder %v209, inf
    %v258 = vsel %vm257, %v209, %v256
    %vm259 = vcmp.eq.f32.partialorder %v209, 0.0
    %v260 = vand.u32 %v209, 2147483648
    %v261 = vsel %vm259, %v260, %v258
    %v262 = vrsqrt.pop %v210
    %v263 = vmul.f32 %v210, %v262
    %vm264 = vcmp.eq.f32.partialorder %v210, inf
    %v265 = vsel %vm264, %v210, %v263
    %vm266 = vcmp.eq.f32.partialorder %v210, 0.0
    %v267 = vand.u32 %v210, 2147483648
    %v268 = vsel %vm266, %v267, %v265
    %v269 = vrsqrt.pop %v211
    %v270 = vmul.f32 %v211, %v269
    %vm271 = vcmp.eq.f32.partialorder %v211, inf
    %v272 = vsel %vm271, %v211, %v270
    %vm273 = vcmp.eq.f32.partialorder %v211, 0.0
    %v274 = vand.u32 %v211, 2147483648
    %v275 = vsel %vm273, %v274, %v272
    %v276 = vrsqrt.pop %v212
    %v277 = vmul.f32 %v212, %v276
    %vm278 = vcmp.eq.f32.partialorder %v212, inf
    %v279 = vsel %vm278, %v212, %v277
    %vm280 = vcmp.eq.f32.partialorder %v212, 0.0
    %v281 = vand.u32 %v212, 2147483648
    %v282 = vsel %vm280, %v281, %v279
    %293 = vrot.lane.b32.xlu0 %v98, 126
    %v294 = vpop.permute.xlu0 %293
    %295 = vrot.lane.b32.xlu0 %v99, 126
    %v296 = vpop.permute.xlu0 %295
    %297 = vrot.lane.b32.xlu0 %v100, 126
    %v298 = vpop.permute.xlu0 %297
    %299 = vrot.lane.b32.xlu0 %v101, 126
    %v300 = vpop.permute.xlu0 %299
    %301 = vrot.lane.b32.xlu0 %v102, 126
    %v302 = vpop.permute.xlu0 %301
    %303 = vrot.lane.b32.xlu0 %v103, 126
    %v304 = vpop.permute.xlu0 %303
    %305 = vrot.lane.b32.xlu0 %v104, 126
    %v306 = vpop.permute.xlu0 %305
    %307 = vrot.lane.b32.xlu0 %v105, 126
    %v308 = vpop.permute.xlu0 %307
    %309 = vrot.lane.b32.xlu0 %v106, 126
    %v310 = vpop.permute.xlu0 %309
    %311 = vrot.lane.b32.xlu0 %v107, 126
    %v312 = vpop.permute.xlu0 %311
    %v313 = vsel %vm158, %v294, %v296
    %v314 = vsel %vm158, %v296, %v298
    %v315 = vsel %vm158, %v298, %v300
    %v316 = vsel %vm158, %v300, %v302
    %v317 = vsel %vm158, %v302, %v304
    %v318 = vsel %vm158, %v304, %v306
    %v319 = vsel %vm158, %v306, %v308
    %v320 = vsel %vm158, %v308, %v310
    %v321 = vsel %vm158, %v310, %v312
    %332 = vrot.lane.b32.xlu0 %v98, 22
    %v333 = vpop.permute.xlu0 %332
    %v335 = vsel %vm181, %v312, %v333
    %v336 = vsub.f32 %v313, %v98
    %v337 = vsub.f32 %v314, %v99
    %v338 = vsub.f32 %v315, %v100
    %v339 = vsub.f32 %v316, %v101
    %v340 = vsub.f32 %v317, %v102
    %v341 = vsub.f32 %v318, %v103
    %v342 = vsub.f32 %v319, %v104
    %v343 = vsub.f32 %v320, %v105
    %v344 = vsub.f32 %v321, %v106
    %v345 = vsub.f32 %v335, %v107
    %v346 = vand.u32 2147483647, %v336
    %v347 = vand.u32 2147483647, %v337
    %v348 = vand.u32 2147483647, %v338
    %v349 = vand.u32 2147483647, %v339
    %v350 = vand.u32 2147483647, %v340
    %v351 = vand.u32 2147483647, %v341
    %v352 = vand.u32 2147483647, %v342
    %v353 = vand.u32 2147483647, %v343
    %v354 = vand.u32 2147483647, %v344
    %v355 = vand.u32 2147483647, %v345
    %v356 = vadd.f32 %v346, 1e-07
    %v357 = vadd.f32 %v347, 1e-07
    %v358 = vadd.f32 %v348, 1e-07
    %v359 = vadd.f32 %v349, 1e-07
    %v360 = vadd.f32 %v350, 1e-07
    %v361 = vadd.f32 %v351, 1e-07
    %v362 = vadd.f32 %v352, 1e-07
    %v363 = vadd.f32 %v353, 1e-07
    %v364 = vadd.f32 %v354, 1e-07
    %v365 = vadd.f32 %v355, 1e-07
    %v366 = vrsqrt.pop %v356
    %v367 = vmul.f32 %v356, %v366
    %vm368 = vcmp.eq.f32.partialorder %v356, inf
    %v369 = vsel %vm368, %v356, %v367
    %vm370 = vcmp.eq.f32.partialorder %v356, 0.0
    %v371 = vand.u32 %v356, 2147483648
    %v372 = vsel %vm370, %v371, %v369
    %v373 = vrsqrt.pop %v357
    %v374 = vmul.f32 %v357, %v373
    %vm375 = vcmp.eq.f32.partialorder %v357, inf
    %v376 = vsel %vm375, %v357, %v374
    %vm377 = vcmp.eq.f32.partialorder %v357, 0.0
    %v378 = vand.u32 %v357, 2147483648
    %v379 = vsel %vm377, %v378, %v376
    %v380 = vrsqrt.pop %v358
    %v381 = vmul.f32 %v358, %v380
    %vm382 = vcmp.eq.f32.partialorder %v358, inf
    %v383 = vsel %vm382, %v358, %v381
    %vm384 = vcmp.eq.f32.partialorder %v358, 0.0
    %v385 = vand.u32 %v358, 2147483648
    %v386 = vsel %vm384, %v385, %v383
    %v387 = vrsqrt.pop %v359
    %v388 = vmul.f32 %v359, %v387
    %vm389 = vcmp.eq.f32.partialorder %v359, inf
    %v390 = vsel %vm389, %v359, %v388
    %vm391 = vcmp.eq.f32.partialorder %v359, 0.0
    %v392 = vand.u32 %v359, 2147483648
    %v393 = vsel %vm391, %v392, %v390
    %v394 = vrsqrt.pop %v360
    %v395 = vmul.f32 %v360, %v394
    %vm396 = vcmp.eq.f32.partialorder %v360, inf
    %v397 = vsel %vm396, %v360, %v395
    %vm398 = vcmp.eq.f32.partialorder %v360, 0.0
    %v399 = vand.u32 %v360, 2147483648
    %v400 = vsel %vm398, %v399, %v397
    %v401 = vrsqrt.pop %v361
    %v402 = vmul.f32 %v361, %v401
    %vm403 = vcmp.eq.f32.partialorder %v361, inf
    %v404 = vsel %vm403, %v361, %v402
    %vm405 = vcmp.eq.f32.partialorder %v361, 0.0
    %v406 = vand.u32 %v361, 2147483648
    %v407 = vsel %vm405, %v406, %v404
    %v408 = vrsqrt.pop %v362
    %v409 = vmul.f32 %v362, %v408
    %vm410 = vcmp.eq.f32.partialorder %v362, inf
    %v411 = vsel %vm410, %v362, %v409
    %vm412 = vcmp.eq.f32.partialorder %v362, 0.0
    %v413 = vand.u32 %v362, 2147483648
    %v414 = vsel %vm412, %v413, %v411
    %v415 = vrsqrt.pop %v363
    %v416 = vmul.f32 %v363, %v415
    %vm417 = vcmp.eq.f32.partialorder %v363, inf
    %v418 = vsel %vm417, %v363, %v416
    %vm419 = vcmp.eq.f32.partialorder %v363, 0.0
    %v420 = vand.u32 %v363, 2147483648
    %v421 = vsel %vm419, %v420, %v418
    %v422 = vrsqrt.pop %v364
    %v423 = vmul.f32 %v364, %v422
    %vm424 = vcmp.eq.f32.partialorder %v364, inf
    %v425 = vsel %vm424, %v364, %v423
    %vm426 = vcmp.eq.f32.partialorder %v364, 0.0
    %v427 = vand.u32 %v364, 2147483648
    %v428 = vsel %vm426, %v427, %v425
    %v429 = vrsqrt.pop %v365
    %v430 = vmul.f32 %v365, %v429
    %vm431 = vcmp.eq.f32.partialorder %v365, inf
    %v432 = vsel %vm431, %v365, %v430
    %vm433 = vcmp.eq.f32.partialorder %v365, 0.0
    %v434 = vand.u32 %v365, 2147483648
    %v435 = vsel %vm433, %v434, %v432
    %v436 = vsub.f32 %v219, %v372
    %v437 = vsub.f32 %v226, %v379
    %v438 = vsub.f32 %v233, %v386
    %v439 = vsub.f32 %v240, %v393
    %v440 = vsub.f32 %v247, %v400
    %v441 = vsub.f32 %v254, %v407
    %v442 = vsub.f32 %v261, %v414
    %v443 = vsub.f32 %v268, %v421
    %v444 = vsub.f32 %v275, %v428
    %v445 = vsub.f32 %v282, %v435
    %v446 = vmul.f32 %v436, %v436
    %v447 = vmul.f32 %v437, %v437
    %v448 = vmul.f32 %v438, %v438
    %v449 = vmul.f32 %v439, %v439
    %v450 = vmul.f32 %v440, %v440
    %v451 = vmul.f32 %v441, %v441
    %v452 = vmul.f32 %v442, %v442
    %v453 = vmul.f32 %v443, %v443
    %v454 = vmul.f32 %v444, %v444
    %v455 = vmul.f32 %v445, %v445
    %v456 = vmul.f32 %v118, %v65
    %v457 = vmul.f32 %v119, %v66
    %v458 = vmul.f32 %v120, %v67
    %v459 = vmul.f32 %v121, %v68
    %v460 = vmul.f32 %v122, %v69
    %v461 = vmul.f32 %v123, %v70
    %v462 = vmul.f32 %v124, %v71
    %v463 = vmul.f32 %v125, %v72
    %v464 = vmul.f32 %v126, %v73
    %v465 = vmul.f32 %v127, %v74
    %v466 = vmul.f32 %v446, %v75
    %v467 = vmul.f32 %v447, %v76
    %v468 = vmul.f32 %v448, %v77
    %v469 = vmul.f32 %v449, %v78
    %v470 = vmul.f32 %v450, %v79
    %v471 = vmul.f32 %v451, %v80
    %v472 = vmul.f32 %v452, %v81
    %v473 = vmul.f32 %v453, %v82
    %v474 = vmul.f32 %v454, %v83
    %v475 = vmul.f32 %v455, %v84
    %v476 = vadd.f32 %v456, %v466
    %v477 = vadd.f32 %v457, %v467
    %v478 = vadd.f32 %v458, %v468
    %v479 = vadd.f32 %v459, %v469
    %v480 = vadd.f32 %v460, %v470
    %v481 = vadd.f32 %v461, %v471
    %v482 = vadd.f32 %v462, %v472
    %v483 = vadd.f32 %v463, %v473
    %v484 = vadd.f32 %v464, %v474
    %v485 = vadd.f32 %v465, %v475
    %v486 = vstv %s85
    %v487 = vadd.s32 %v486, %v87
    %vm488 = vcmp.lt.s32.totalorder %v487, 6
    %v489 = vsel %vm488, 1, 0
    %vm490 = vcmp.eq.s32.totalorder %v489, 1
    %v491 = vsel %vm490, %v476, 0.0
    %v492 = vsel %vm490, %v477, 0.0
    %v493 = vsel %vm490, %v478, 0.0
    %v494 = vsel %vm490, %v479, 0.0
    %v495 = vsel %vm490, %v480, 0.0
    %v496 = vsel %vm490, %v481, 0.0
    %v497 = vsel %vm490, %v482, 0.0
    %v498 = vsel %vm490, %v483, 0.0
    %v499 = vsel %vm490, %v484, 0.0
    %v500 = vsel %vm490, %v485, 0.0
    %v501 = vadd.f32 %v491, 0.0
    %v502 = vadd.f32 %v492, 0.0
    %v503 = vadd.f32 %v493, 0.0
    %v504 = vadd.f32 %v494, 0.0
    %v505 = vadd.f32 %v495, 0.0
    %v506 = vadd.f32 %v496, 0.0
    %v507 = vadd.f32 %v497, 0.0
    %v508 = vadd.f32 %v498, 0.0
    %v509 = vadd.f32 %v499, 0.0
    %v510 = vadd.f32 %v500, 0.0
    %511 = vst [vmem:[#allocation10] sm:$0xff] %v501
    %512 = vst [vmem:[#allocation10 + $0x8] sm:$0xff] %v502
    %513 = vst [vmem:[#allocation10 + $0x10] sm:$0xff] %v503
    %514 = vst [vmem:[#allocation10 + $0x18] sm:$0xff] %v504
    %515 = vst [vmem:[#allocation10 + $0x20] sm:$0xff] %v505
    %516 = vst [vmem:[#allocation10 + $0x28] sm:$0xff] %v506
    %517 = vst [vmem:[#allocation10 + $0x30] sm:$0xff] %v507
    %518 = vst [vmem:[#allocation10 + $0x38] sm:$0xff] %v508
    %519 = vst [vmem:[#allocation10 + $0x40] sm:$0xff] %v509
    %vm520 = vcmask 195584
    %521 = vst.msk [vmem:[#allocation10 + $0x48] sm:$0xff] %vm520, %v510
    // Predicated region
    $region34: #{tpu_custom_call.1} parent=1 // pred_check
      _
    $region35: #{tpu_custom_call.1} parent=1 // pred_check_branch
      %523 = sbr.rel (0) target = $region37
    $region36: #{tpu_custom_call.1} parent=1 // pred_region
      %s525 = ssub.s32 1280, 1280
      %526 = vsyncadd [#allocation4], %s525
      %s528 = sshll.u32 [#allocation10], 4
      %s529 = int_to_ptr.vmem [resolvable:$true] %s528
      %531 = dma.vmem_to_hbm [thread:$0]  %s529, 1280, %s4, [#allocation4]
    $region37: #{tpu_custom_call.1} parent=1 // pred_fallthru
      _
    // Predicated region
    $region38: #{tpu_custom_call.1} parent=1 // pred_check
      _
    $region39: #{tpu_custom_call.1} parent=1 // pred_check_branch
      %533 = sbr.rel (0) target = $region41
    $region40: #{tpu_custom_call.1} parent=1 // pred_region
      %534 = dma.done [#allocation4], 1280
    $region41: #{tpu_custom_call.1} parent=1 // pred_fallthru
      _
    %535 = vsyncpa [#allocation3], 1
    %536 = vsyncpa [#allocation6], 1
    %537 = vsyncpa [#allocation9], 1
    %538 = vsyncpa [#allocation4], 1

</llo_original>
